<compile_context>
chip_gen: v5e
topology: v5e:2x2
jax: 0.10.0
libtpu: 0.0.40
codegen_flags: <defaults>
</compile_context>

<pallas_src>
import jax
import jax.numpy as jnp
from jax.experimental import pallas as pl
from jax.experimental.pallas import tpu as pltpu

# ---------------- model dimensions (synthetic CVAE / implicit net) ----------
B = 2            # batch
T = 8            # query points per sample              pos: (B, T, 3)
C, HW = 4, 16    # x: (B, C, HW, HW), depth: (B, 1, HW, HW)
HID = 32         # hidden width
LAT = 16         # latent width
NHEAD = 8        # merged head width: qual(1) | rot(4) | force(3)
N_INTER = 8 + 3 + 3                       # cat(rotations(8), force(3), pos[:,0,:](3))
K_DX = HW * HW + C * HW * HW              # 1280: fused [depth | x] contraction dim


def _r16(n):
    """Round up to a multiple of 16 (bf16 packs 2 rows/sublane, 8 sublanes/tile)."""
    return (n + 15) // 16 * 16


# ---- packed bf16 weight-slab row offsets (all multiples of 16, lane offset 0) ----
R_DX   = 0                                # (K_DX, 2*HID)   block_diag(wd, wx)
R_DDXX = R_DX + _r16(K_DX)                # (2*HID, 2*HID)  block_diag(we_d, wh_x)
R_WEI  = R_DDXX + _r16(2 * HID)           # (N_INTER, HID)  we_i
R_WHP  = R_WEI + _r16(N_INTER)            # (3, HID)        wh_p
R_ZEXT = R_WHP + _r16(3)                  # (HID, 2*LAT+HID) [wmu | wlv | wmu@wh_z]
R_HEAD = R_ZEXT + _r16(HID)               # (HID, NHEAD)    [wq | wr | wf]
R_TOT  = R_HEAD + _r16(HID)
W_COLS = max(2 * HID, 2 * LAT + HID)      # lane width of the packed slabs (64)


def _fused_kernel(
    # ---- data ----
    inter_ref,    # (B, N_INTER)      f32 : cat(rot(8), force(3), pos[:,0,:](3))
    dx_ref,       # (B, K_DX)         f32 : cat(depth_flat, x_flat)
    pos_ref,      # (B*T, 3)          f32
    # ---- packed params ----
    w_ref,        # (R_TOT, W_COLS)   bf16 : all weights, tile-aligned segments
    b_ref,        # (8, W_COLS)       f32  : all biases, one segment per row
    # ---- output ----
    out_ref,      # (B*T + 1, NHEAD)  f32 : rows 0:BT = qual|rot|force, row BT lane0 = kl
):
    f32, bf16 = jnp.float32, jnp.bfloat16

    Bb = inter_ref.shape[0]
    BT = pos_ref.shape[0]
    Tt = BT // Bb

    # ---- 1) fused [depth | x] feature: one block-diagonal matmul ------------
    dx_feat = jnp.maximum(
        jnp.dot(dx_ref[...].astype(bf16), w_ref[R_DX:R_DX + K_DX, 0:2 * HID],
                preferred_element_type=f32)
        + b_ref[0:1, 0:2 * HID], 0.0)                  # (B, 64) = [depth_feat | x_feat]

    # ---- 2) fused we_d | wh_x (shared LHS, block-diagonal) ------------------
    feat2 = jnp.dot(dx_feat.astype(bf16),
                    w_ref[R_DDXX:R_DDXX + 2 * HID, 0:2 * HID],
                    preferred_element_type=f32)        # (B, 64)
    enc_d = feat2[:, 0:HID]            # depth_feat @ we_d
    dec_x = feat2[:, HID:2 * HID]      # x_feat     @ wh_x

    # ---- 3) CVAE encoder hidden ---------------------------------------------
    h_enc = jnp.maximum(
        jnp.dot(inter_ref[...].astype(bf16), w_ref[R_WEI:R_WEI + N_INTER, 0:HID],
                preferred_element_type=f32)
        + enc_d + b_ref[1:2, 0:HID], 0.0)              # (B, HID)

    # ---- 4) fused latent stats + z's contribution to the decoder ------------
    # columns: [mu | log_var | mu@wh_z]; wmu@wh_z and bmu@wh_z are folded
    # host-side. Only valid on the eval path where z == z_mean.
    # TODO(synk): train-mode reparameterization (z = mu + eps*sigma) omitted; it
    # needs wh_z unfolded plus a PRNG draw (pltpu.prng_random_bits).
    z_ext = (jnp.dot(h_enc.astype(bf16),
                     w_ref[R_ZEXT:R_ZEXT + HID, 0:2 * LAT + HID],
                     preferred_element_type=f32)
             + b_ref[2:3, 0:2 * LAT + HID])            # (B, 2*LAT + HID)
    z_mean = z_ext[:, 0:LAT]
    z_lvar = z_ext[:, LAT:2 * LAT]
    g_z = z_ext[:, 2 * LAT:2 * LAT + HID]              # == z_mean @ wh_z

    # KL( N(mu, sigma) || N(0, 1) ): sum over latent dims, mean over batch.
    kl_elem = -0.5 * (1.0 + z_lvar - z_mean * z_mean - jnp.exp(z_lvar))   # (B, LAT)
    kl = jnp.sum(jnp.sum(kl_elem, axis=-1, keepdims=True),
                 axis=0, keepdims=True) * (1.0 / Bb)   # (1, 1)

    # ---- 5) decoder: global feature, broadcast over the T query points ------
    g = dec_x + g_z + b_ref[3:4, 0:HID]                # (B, HID)
    # sublane broadcast instead of a one-hot selector matmul (B tiny & static)
    g_rep = jnp.concatenate(
        [jnp.broadcast_to(g[b:b + 1, :], (Tt, HID)) for b in range(Bb)],
        axis=0)                                        # (BT, HID)

    h2 = jnp.maximum(
        jnp.dot(pos_ref[...].astype(bf16), w_ref[R_WHP:R_WHP + 3, 0:HID],
                preferred_element_type=f32)
        + g_rep, 0.0)                                  # (BT, HID)

    # ---- 6) fused heads: [ qual | rot quat(4) | force(3) ] ------------------
    head = (jnp.dot(h2.astype(bf16), w_ref[R_HEAD:R_HEAD + HID, 0:NHEAD],
                    preferred_element_type=f32)
            + b_ref[4:5, 0:NHEAD])                     # (BT, NHEAD)

    lane = jax.lax.broadcasted_iota(jnp.int32, head.shape, 1)
    is_rot = jnp.logical_and(lane >= 1, lane < 5)
    rsq = jnp.sum(jnp.where(is_rot, head * head, 0.0), axis=-1, keepdims=True)
    inv_norm = jax.lax.rsqrt(rsq + 1e-12)
    final = jnp.where(lane == 0, jax.nn.sigmoid(head),
                      jnp.where(is_rot, head * inv_norm, head))           # (BT, NHEAD)

    # ---- single output slab: rows 0:BT = heads, row BT lane 0 = kl ----------
    out_ref[0:BT, :] = final
    lane_k = jax.lax.broadcasted_iota(jnp.int32, (1, NHEAD), 1)
    out_ref[BT:BT + 1, :] = jnp.where(lane_k == 0,
                                      jnp.broadcast_to(kl, (1, NHEAD)), 0.0)


def init_params(key):
    """Deterministic synthetic parameters, packed once into two tile-aligned slabs."""
    def lin(k, fi, fo):
        kw, kb = jax.random.split(k)
        w = jax.random.normal(kw, (fi, fo), jnp.float32) / jnp.sqrt(jnp.float32(fi))
        b = jax.random.normal(kb, (1, fo), jnp.float32) * 0.01
        return w, b

    ks = jax.random.split(key, 9)
    wd, bd = lin(ks[0], HW * HW, HID)                 # depth -> feature
    we_full, be = lin(ks[1], N_INTER + HID, HID)      # enc hidden over cat(inter, depth_feat)
    we_i, we_d = we_full[:N_INTER], we_full[N_INTER:]
    wmu, bmu = lin(ks[2], HID, LAT)
    wlv, blv = lin(ks[3], HID, LAT)
    wx, bx = lin(ks[4], C * HW * HW, HID)             # x -> feature
    wh_full, bh = lin(ks[5], 3 + HID + LAT, HID)      # per-point hidden over cat(pos, x_feat, z)
    wh_p, wh_x, wh_z = wh_full[:3], wh_full[3:3 + HID], wh_full[3 + HID:]
    wq, bq = lin(ks[6], HID, 1)                       # qual head
    wr, br = lin(ks[7], HID, 4)                       # rotation head (quaternion)
    wf, bf = lin(ks[8], HID, 3)                       # force head

    # eval-path folding: z = z_mean  =>  z @ wh_z = h_enc @ (wmu@wh_z) + bmu@wh_z
    # (only valid while the kernel runs the eval path; see TODO in kernel)
    w_gz = wmu @ wh_z                                 # (HID, HID)
    b_gz = bmu @ wh_z                                 # (1, HID)

    # ---- bf16 weight slab: every segment starts at a 16-row / lane-0 offset ----
    w_slab = jnp.zeros((R_TOT, W_COLS), jnp.float32)
    # block_diag(wd, wx): [depth | x] -> [depth_feat | x_feat]
    w_slab = w_slab.at[R_DX:R_DX + HW * HW, 0:HID].set(wd)
    w_slab = w_slab.at[R_DX + HW * HW:R_DX + K_DX, HID:2 * HID].set(wx)
    # block_diag(we_d, wh_x): [depth_feat | x_feat] -> [enc contrib | dec contrib]
    w_slab = w_slab.at[R_DDXX:R_DDXX + HID, 0:HID].set(we_d)
    w_slab = w_slab.at[R_DDXX + HID:R_DDXX + 2 * HID, HID:2 * HID].set(wh_x)
    w_slab = w_slab.at[R_WEI:R_WEI + N_INTER, 0:HID].set(we_i)
    w_slab = w_slab.at[R_WHP:R_WHP + 3, 0:HID].set(wh_p)
    # [wmu | wlv | wmu@wh_z]
    w_slab = w_slab.at[R_ZEXT:R_ZEXT + HID, 0:LAT].set(wmu)
    w_slab = w_slab.at[R_ZEXT:R_ZEXT + HID, LAT:2 * LAT].set(wlv)
    w_slab = w_slab.at[R_ZEXT:R_ZEXT + HID, 2 * LAT:2 * LAT + HID].set(w_gz)
    # [wq | wr | wf]
    w_slab = w_slab.at[R_HEAD:R_HEAD + HID, 0:1].set(wq)
    w_slab = w_slab.at[R_HEAD:R_HEAD + HID, 1:5].set(wr)
    w_slab = w_slab.at[R_HEAD:R_HEAD + HID, 5:8].set(wf)
    w_slab = w_slab.astype(jnp.bfloat16)              # MXU feed dtype (f32 accumulation)

    # ---- f32 bias slab: one segment per row, all at lane offset 0 ----
    b_slab = jnp.zeros((8, W_COLS), jnp.float32)
    b_slab = b_slab.at[0:1, 0:HID].set(bd)
    b_slab = b_slab.at[0:1, HID:2 * HID].set(bx)
    b_slab = b_slab.at[1:2, 0:HID].set(be)
    b_slab = b_slab.at[2:3, 0:LAT].set(bmu)
    b_slab = b_slab.at[2:3, LAT:2 * LAT].set(blv)
    b_slab = b_slab.at[2:3, 2 * LAT:2 * LAT + HID].set(b_gz)
    b_slab = b_slab.at[3:4, 0:HID].set(bh)
    b_slab = b_slab.at[4:5, 0:1].set(bq)
    b_slab = b_slab.at[4:5, 1:5].set(br)
    b_slab = b_slab.at[4:5, 5:8].set(bf)

    return w_slab, b_slab


def wrapper_forward(x, y, pos, obs, camera_id, params):
    """Mirrors Wrapper.forward (task_encode=False, which_net != 'giga_image', eval=True)."""
    label, rotations, force, depth = y
    del label, obs, camera_id  # unused on this path

    bsz, nq = pos.shape[0], pos.shape[1]
    inter_params = jnp.concatenate(
        [rotations.reshape(bsz, 8), force, pos[:, 0, :]], axis=-1).astype(jnp.float32)   # (B, 14)
    # fused [depth | x] activation feeding the block-diagonal first matmul
    dx_cat = jnp.concatenate(
        [depth.reshape(bsz, -1), x.reshape(bsz, -1)], axis=-1).astype(jnp.float32)       # (B, 1280)
    pos_flat = pos.reshape(bsz * nq, 3).astype(jnp.float32)                              # (B*T, 3)

    w_slab, b_slab = params
    inputs = (inter_params, dx_cat, pos_flat, w_slab, b_slab)

    out_shape = jax.ShapeDtypeStruct((bsz * nq + 1, NHEAD), jnp.float32)
    vmem = lambda: pl.BlockSpec(memory_space=pltpu.MemorySpace.VMEM)

    out = pl.pallas_call(
        _fused_kernel,
        out_shape=out_shape,
        in_specs=[vmem() for _ in range(len(inputs))],
        out_specs=vmem(),
    )(*inputs)

    kl_loss_z = out[bsz * nq, 0]                     # scalar
    heads = out[:bsz * nq].reshape(bsz, nq, NHEAD)
    point_pred = heads[..., 0]                       # qual_out.squeeze(-1)  -> (B, T)
    rotation_pred = heads[..., 1:5]                  # rot_out.squeeze(1)    -> (B, T, 4)
    force_pred = heads[..., 5:8]                     # force_out.squeeze(-2) -> (B, T, 3)
    return kl_loss_z, point_pred, rotation_pred, force_pred


if __name__ == "__main__":
    key = jax.random.PRNGKey(0)
    k = jax.random.split(key, 8)

    x = jax.random.normal(k[0], (B, C, HW, HW), jnp.float32)        # NCHW
    depth = jax.random.normal(k[1], (B, 1, HW, HW), jnp.float32)    # NCHW
    rotations = jax.random.normal(k[2], (B, 2, 4), jnp.float32)     # .view(B, 8)
    force = jax.random.normal(k[3], (B, 3), jnp.float32)
    label = jnp.ones((B,), jnp.float32)                             # unused in forward
    pos = jax.random.uniform(k[4], (B, T, 3), jnp.float32)
    obs = jax.random.normal(k[5], (B, 8), jnp.float32)              # unused (task_encode=False)
    camera_id = jnp.zeros((B,), jnp.int32)                          # unused (not 'giga_image')

    params = init_params(k[6])
    y = (label, rotations, force, depth)

    out = wrapper_forward(x, y, pos, obs, camera_id, params)
    out = jax.block_until_ready(out)

    kl_loss_z, point_pred, rotation_pred, force_pred = out
    assert kl_loss_z.shape == ()
    assert point_pred.shape == (B, T)
    assert rotation_pred.shape == (B, T, 4)
    assert force_pred.shape == (B, T, 3)
    assert bool(jnp.all(jnp.isfinite(point_pred)))
    print("KERNEL_OK")
</pallas_src>

<mosaic_0001>
module attributes {stable_mosaic.version = 11 : i64} {
  func.func @_fused_kernel(%arg0: memref<2x14xf32, #tpu.memory_space<vmem>>, %arg1: memref<2x1280xf32, #tpu.memory_space<vmem>>, %arg2: memref<16x3xf32, #tpu.memory_space<vmem>>, %arg3: memref<1440x64xbf16, #tpu.memory_space<vmem>>, %arg4: memref<8x64xf32, #tpu.memory_space<vmem>>, %arg5: memref<17x8xf32, #tpu.memory_space<vmem>>) attributes {dimension_semantics = [], scalar_prefetch = 0 : i64, scratch_operands = 0 : i64, tpu.core_type = #tpu.core_type<tc>} {
    %c0 = arith.constant 0 : index
    %c0_0 = arith.constant 0 : index
    %0 = vector.load %arg1[%c0, %c0_0] : memref<2x1280xf32, #tpu.memory_space<vmem>>, vector<2x1280xf32>
    %1 = arith.truncf %0 : vector<2x1280xf32> to vector<2x1280xbf16>
    %c0_1 = arith.constant 0 : index
    %c0_2 = arith.constant 0 : index
    %2 = vector.load %arg3[%c0_1, %c0_2] : memref<1440x64xbf16, #tpu.memory_space<vmem>>, vector<1280x64xbf16>
    %cst = arith.constant dense<0.000000e+00> : vector<2x64xf32>
    %3 = tpu.matmul %1, %2, %cst {dimension_numbers = #tpu.dot_dimension_numbers<[1], [0], [0], [1], [0, 0, 1, 1], [], []>} : vector<2x1280xbf16>, vector<1280x64xbf16>, vector<2x64xf32> -> vector<2x64xf32>
    %c0_3 = arith.constant 0 : index
    %c0_4 = arith.constant 0 : index
    %4 = vector.load %arg4[%c0_3, %c0_4] : memref<8x64xf32, #tpu.memory_space<vmem>>, vector<1x64xf32>
    %5 = vector.broadcast %4 : vector<1x64xf32> to vector<2x64xf32>
    %6 = arith.addf %3, %5 : vector<2x64xf32>
    %cst_5 = arith.constant 0.000000e+00 : f32
    %7 = vector.broadcast %cst_5 : f32 to vector<2x64xf32>
    %8 = arith.maximumf %6, %7 : vector<2x64xf32>
    %9 = arith.truncf %8 : vector<2x64xf32> to vector<2x64xbf16>
    %c1280 = arith.constant 1280 : index
    %c0_6 = arith.constant 0 : index
    %10 = vector.load %arg3[%c1280, %c0_6] : memref<1440x64xbf16, #tpu.memory_space<vmem>>, vector<64x64xbf16>
    %cst_7 = arith.constant dense<0.000000e+00> : vector<2x64xf32>
    %11 = tpu.matmul %9, %10, %cst_7 {dimension_numbers = #tpu.dot_dimension_numbers<[1], [0], [0], [1], [0, 0, 1, 1], [], []>} : vector<2x64xbf16>, vector<64x64xbf16>, vector<2x64xf32> -> vector<2x64xf32>
    %12 = vector.extract_strided_slice %11 {offsets = [0, 0], sizes = [2, 32], strides = [1, 1]} : vector<2x64xf32> to vector<2x32xf32>
    %13 = vector.extract_strided_slice %11 {offsets = [0, 32], sizes = [2, 32], strides = [1, 1]} : vector<2x64xf32> to vector<2x32xf32>
    %c0_8 = arith.constant 0 : index
    %c0_9 = arith.constant 0 : index
    %14 = vector.load %arg0[%c0_8, %c0_9] : memref<2x14xf32, #tpu.memory_space<vmem>>, vector<2x14xf32>
    %15 = arith.truncf %14 : vector<2x14xf32> to vector<2x14xbf16>
    %c1344 = arith.constant 1344 : index
    %c0_10 = arith.constant 0 : index
    %16 = vector.load %arg3[%c1344, %c0_10] : memref<1440x64xbf16, #tpu.memory_space<vmem>>, vector<14x32xbf16>
    %cst_11 = arith.constant dense<0.000000e+00> : vector<2x32xf32>
    %17 = tpu.matmul %15, %16, %cst_11 {dimension_numbers = #tpu.dot_dimension_numbers<[1], [0], [0], [1], [0, 0, 1, 1], [], []>} : vector<2x14xbf16>, vector<14x32xbf16>, vector<2x32xf32> -> vector<2x32xf32>
    %18 = arith.addf %17, %12 : vector<2x32xf32>
    %c1 = arith.constant 1 : index
    %c0_12 = arith.constant 0 : index
    %19 = vector.load %arg4[%c1, %c0_12] : memref<8x64xf32, #tpu.memory_space<vmem>>, vector<1x32xf32>
    %20 = vector.broadcast %19 : vector<1x32xf32> to vector<2x32xf32>
    %21 = arith.addf %18, %20 : vector<2x32xf32>
    %cst_13 = arith.constant 0.000000e+00 : f32
    %22 = vector.broadcast %cst_13 : f32 to vector<2x32xf32>
    %23 = arith.maximumf %21, %22 : vector<2x32xf32>
    %24 = arith.truncf %23 : vector<2x32xf32> to vector<2x32xbf16>
    %c1376 = arith.constant 1376 : index
    %c0_14 = arith.constant 0 : index
    %25 = vector.load %arg3[%c1376, %c0_14] : memref<1440x64xbf16, #tpu.memory_space<vmem>>, vector<32x64xbf16>
    %cst_15 = arith.constant dense<0.000000e+00> : vector<2x64xf32>
    %26 = tpu.matmul %24, %25, %cst_15 {dimension_numbers = #tpu.dot_dimension_numbers<[1], [0], [0], [1], [0, 0, 1, 1], [], []>} : vector<2x32xbf16>, vector<32x64xbf16>, vector<2x64xf32> -> vector<2x64xf32>
    %c2 = arith.constant 2 : index
    %c0_16 = arith.constant 0 : index
    %27 = vector.load %arg4[%c2, %c0_16] : memref<8x64xf32, #tpu.memory_space<vmem>>, vector<1x64xf32>
    %28 = vector.broadcast %27 : vector<1x64xf32> to vector<2x64xf32>
    %29 = arith.addf %26, %28 : vector<2x64xf32>
    %30 = vector.extract_strided_slice %29 {offsets = [0, 0], sizes = [2, 16], strides = [1, 1]} : vector<2x64xf32> to vector<2x16xf32>
    %31 = vector.extract_strided_slice %29 {offsets = [0, 16], sizes = [2, 16], strides = [1, 1]} : vector<2x64xf32> to vector<2x16xf32>
    %32 = vector.extract_strided_slice %29 {offsets = [0, 32], sizes = [2, 32], strides = [1, 1]} : vector<2x64xf32> to vector<2x32xf32>
    %cst_17 = arith.constant 1.000000e+00 : f32
    %33 = vector.broadcast %cst_17 : f32 to vector<2x16xf32>
    %34 = arith.addf %33, %31 : vector<2x16xf32>
    %35 = arith.mulf %30, %30 : vector<2x16xf32>
    %36 = arith.subf %34, %35 : vector<2x16xf32>
    %37 = math.exp %31 : vector<2x16xf32>
    %38 = arith.subf %36, %37 : vector<2x16xf32>
    %cst_18 = arith.constant -5.000000e-01 : f32
    %39 = vector.broadcast %cst_18 : f32 to vector<2x16xf32>
    %40 = arith.mulf %39, %38 : vector<2x16xf32>
    %cst_19 = arith.constant dense<0.000000e+00> : vector<2xf32>
    %41 = vector.multi_reduction <add>, %40, %cst_19 [1] : vector<2x16xf32> to vector<2xf32>
    %42 = vector.shape_cast %41 : vector<2xf32> to vector<2x1xf32>
    %cst_20 = arith.constant dense<0.000000e+00> : vector<1xf32>
    %43 = vector.multi_reduction <add>, %42, %cst_20 [0] : vector<2x1xf32> to vector<1xf32>
    %44 = vector.shape_cast %43 : vector<1xf32> to vector<1x1xf32>
    %cst_21 = arith.constant 5.000000e-01 : f32
    %45 = vector.broadcast %cst_21 : f32 to vector<1x1xf32>
    %46 = arith.mulf %44, %45 : vector<1x1xf32>
    %47 = arith.addf %13, %32 : vector<2x32xf32>
    %c3 = arith.constant 3 : index
    %c0_22 = arith.constant 0 : index
    %48 = vector.load %arg4[%c3, %c0_22] : memref<8x64xf32, #tpu.memory_space<vmem>>, vector<1x32xf32>
    %49 = vector.broadcast %48 : vector<1x32xf32> to vector<2x32xf32>
    %50 = arith.addf %47, %49 : vector<2x32xf32>
    %51 = vector.extract_strided_slice %50 {offsets = [0, 0], sizes = [1, 32], strides = [1, 1]} : vector<2x32xf32> to vector<1x32xf32>
    %52 = vector.shape_cast %51 : vector<1x32xf32> to vector<1x32xf32>
    %53 = vector.broadcast %52 : vector<1x32xf32> to vector<8x32xf32>
    %54 = vector.extract_strided_slice %50 {offsets = [1, 0], sizes = [1, 32], strides = [1, 1]} : vector<2x32xf32> to vector<1x32xf32>
    %55 = vector.shape_cast %54 : vector<1x32xf32> to vector<1x32xf32>
    %56 = vector.broadcast %55 : vector<1x32xf32> to vector<8x32xf32>
    %57 = tpu.concatenate %53, %56 in 0 : vector<8x32xf32>, vector<8x32xf32> -> vector<16x32xf32>
    %c0_23 = arith.constant 0 : index
    %c0_24 = arith.constant 0 : index
    %58 = vector.load %arg2[%c0_23, %c0_24] : memref<16x3xf32, #tpu.memory_space<vmem>>, vector<16x3xf32>
    %59 = arith.truncf %58 : vector<16x3xf32> to vector<16x3xbf16>
    %c1360 = arith.constant 1360 : index
    %c0_25 = arith.constant 0 : index
    %60 = vector.load %arg3[%c1360, %c0_25] : memref<1440x64xbf16, #tpu.memory_space<vmem>>, vector<3x32xbf16>
    %cst_26 = arith.constant dense<0.000000e+00> : vector<16x32xf32>
    %61 = tpu.matmul %59, %60, %cst_26 {dimension_numbers = #tpu.dot_dimension_numbers<[1], [0], [0], [1], [0, 0, 1, 1], [], []>} : vector<16x3xbf16>, vector<3x32xbf16>, vector<16x32xf32> -> vector<16x32xf32>
    %62 = arith.addf %61, %57 : vector<16x32xf32>
    %cst_27 = arith.constant 0.000000e+00 : f32
    %63 = vector.broadcast %cst_27 : f32 to vector<16x32xf32>
    %64 = arith.maximumf %62, %63 : vector<16x32xf32>
    %65 = arith.truncf %64 : vector<16x32xf32> to vector<16x32xbf16>
    %c1408 = arith.constant 1408 : index
    %c0_28 = arith.constant 0 : index
    %66 = vector.load %arg3[%c1408, %c0_28] : memref<1440x64xbf16, #tpu.memory_space<vmem>>, vector<32x8xbf16>
    %cst_29 = arith.constant dense<0.000000e+00> : vector<16x8xf32>
    %67 = tpu.matmul %65, %66, %cst_29 {dimension_numbers = #tpu.dot_dimension_numbers<[1], [0], [0], [1], [0, 0, 1, 1], [], []>} : vector<16x32xbf16>, vector<32x8xbf16>, vector<16x8xf32> -> vector<16x8xf32>
    %c4 = arith.constant 4 : index
    %c0_30 = arith.constant 0 : index
    %68 = vector.load %arg4[%c4, %c0_30] : memref<8x64xf32, #tpu.memory_space<vmem>>, vector<1x8xf32>
    %69 = vector.broadcast %68 : vector<1x8xf32> to vector<16x8xf32>
    %70 = arith.addf %67, %69 : vector<16x8xf32>
    %71 = tpu.iota {dimensions = array<i32: 1>} : vector<16x8xi32>
    %c1_i32 = arith.constant 1 : i32
    %72 = vector.broadcast %c1_i32 : i32 to vector<16x8xi32>
    %73 = arith.cmpi sge, %71, %72 : vector<16x8xi32>
    %c5_i32 = arith.constant 5 : i32
    %74 = vector.broadcast %c5_i32 : i32 to vector<16x8xi32>
    %75 = arith.cmpi slt, %71, %74 : vector<16x8xi32>
    %76 = arith.andi %73, %75 : vector<16x8xi1>
    %77 = arith.mulf %70, %70 : vector<16x8xf32>
    %cst_31 = arith.constant 0.000000e+00 : f32
    %78 = vector.broadcast %cst_31 : f32 to vector<16x8xf32>
    %79 = arith.select %76, %77, %78 : vector<16x8xi1>, vector<16x8xf32>
    %cst_32 = arith.constant dense<0.000000e+00> : vector<16xf32>
    %80 = vector.multi_reduction <add>, %79, %cst_32 [1] : vector<16x8xf32> to vector<16xf32>
    %81 = vector.shape_cast %80 : vector<16xf32> to vector<16x1xf32>
    %cst_33 = arith.constant 9.99999996E-13 : f32
    %82 = vector.broadcast %cst_33 : f32 to vector<16x1xf32>
    %83 = arith.addf %81, %82 : vector<16x1xf32>
    %84 = math.rsqrt %83 : vector<16x1xf32>
    %c0_i32 = arith.constant 0 : i32
    %85 = vector.broadcast %c0_i32 : i32 to vector<16x8xi32>
    %86 = arith.cmpi eq, %71, %85 : vector<16x8xi32>
    %87 = arith.negf %70 : vector<16x8xf32>
    %88 = math.exp %87 : vector<16x8xf32>
    %cst_34 = arith.constant 1.000000e+00 : f32
    %89 = vector.broadcast %cst_34 : f32 to vector<16x8xf32>
    %90 = arith.addf %89, %88 : vector<16x8xf32>
    %91 = arith.divf %89, %90 : vector<16x8xf32>
    %92 = vector.broadcast %84 : vector<16x1xf32> to vector<16x8xf32>
    %93 = arith.mulf %70, %92 : vector<16x8xf32>
    %94 = arith.select %76, %93, %70 : vector<16x8xi1>, vector<16x8xf32>
    %95 = arith.select %86, %91, %94 : vector<16x8xi1>, vector<16x8xf32>
    %c0_35 = arith.constant 0 : index
    %c0_36 = arith.constant 0 : index
    %96 = vector.load %arg5[%c0_35, %c0_36] : memref<17x8xf32, #tpu.memory_space<vmem>>, vector<16x8xf32>
    tpu.vector_store %arg5[%c0_35, %c0_36], %95 {strides = array<i32>} : memref<17x8xf32, #tpu.memory_space<vmem>>, vector<16x8xf32>,
    %97 = tpu.iota {dimensions = array<i32: 1>} : vector<1x8xi32>
    %c0_i32_37 = arith.constant 0 : i32
    %98 = vector.broadcast %c0_i32_37 : i32 to vector<1x8xi32>
    %99 = arith.cmpi eq, %97, %98 : vector<1x8xi32>
    %100 = vector.shape_cast %46 : vector<1x1xf32> to vector<1x1xf32>
    %101 = vector.broadcast %100 : vector<1x1xf32> to vector<1x8xf32>
    %cst_38 = arith.constant 0.000000e+00 : f32
    %102 = vector.broadcast %cst_38 : f32 to vector<1x8xf32>
    %103 = arith.select %99, %101, %102 : vector<1x8xi1>, vector<1x8xf32>
    %c16 = arith.constant 16 : index
    %c0_39 = arith.constant 0 : index
    %104 = vector.load %arg5[%c16, %c0_39] : memref<17x8xf32, #tpu.memory_space<vmem>>, vector<1x8xf32>
    tpu.vector_store %arg5[%c16, %c0_39], %103 {strides = array<i32>} : memref<17x8xf32, #tpu.memory_space<vmem>>, vector<1x8xf32>,
    return
  }
}

</mosaic_0001>

<llo_original>
// kernel: tpu_custom_call.1
$region0: #{tpu_custom_call.1}
  #allocation0 [shape = 'u32[]', space=smem, size = 0x4, offset = 0x4, fixed_abs, tag = 'smem constant byte address 0x4 - core index']
  #allocation1 [shape = 'u32[72,128]{1,0:T(1,128)}', space=vmem, size = 0x9000, scoped, tag = 'internal scratch']
  %s0 = inlined_call_operand.vmem [shape: f32[2,14], index: 0, kind: input, shape index: {}]
  %s1 = inlined_call_operand.vmem [shape: f32[2,1280], index: 1, kind: input, shape index: {}]
  %s2 = inlined_call_operand.vmem [shape: f32[16,3], index: 2, kind: input, shape index: {}]
  %s3 = inlined_call_operand.vmem [shape: bf16[1440,64], index: 3, kind: input, shape index: {}]
  %s4 = inlined_call_operand.vmem [shape: f32[8,64], index: 4, kind: input, shape index: {}]
  %s5 = inlined_call_operand.vmem [shape: f32[17,8], index: 5, kind: output, shape index: {}]
  %s6 = sld [smem:[#allocation0]]
  $region30: #{tpu_custom_call.1} parent=0
    _
  %s8 = ssub.s32 1, %s6
  %s9 = scalar_select 0, %s8, %s6
  // Predicated region
  $region2: #{tpu_custom_call.1} parent=0 // pred_check
    _
  $region3: #{tpu_custom_call.1} parent=0 // pred_check_branch
    %11 = sbr.rel (0) target = $region5
  $region4: #{tpu_custom_call.1} parent=0 // pred_region
    _
  $region5: #{tpu_custom_call.1} parent=0 // pred_fallthru
    _
  // Predicated region
  $region6: #{tpu_custom_call.1} parent=0 // pred_check
    _
  $region7: #{tpu_custom_call.1} parent=0 // pred_check_branch
    %13 = sbr.rel (0) target = $region9
  $region8: #{tpu_custom_call.1} parent=0 // pred_region
    _
  $region9: #{tpu_custom_call.1} parent=0 // pred_fallthru
    _
  // Predicated region
  $region10: #{tpu_custom_call.1} parent=0 // pred_check
    _
  $region11: #{tpu_custom_call.1} parent=0 // pred_check_branch
    %15 = sbr.rel (0) target = $region13
  $region12: #{tpu_custom_call.1} parent=0 // pred_region
    _
  $region13: #{tpu_custom_call.1} parent=0 // pred_fallthru
    _
  // Predicated region
  $region14: #{tpu_custom_call.1} parent=0 // pred_check
    _
  $region15: #{tpu_custom_call.1} parent=0 // pred_check_branch
    %17 = sbr.rel (0) target = $region17
  $region16: #{tpu_custom_call.1} parent=0 // pred_region
    _
  $region17: #{tpu_custom_call.1} parent=0 // pred_fallthru
    _
  // Predicated region
  $region18: #{tpu_custom_call.1} parent=0 // pred_check
    _
  $region19: #{tpu_custom_call.1} parent=0 // pred_check_branch
    %19 = sbr.rel (0) target = $region21
  $region20: #{tpu_custom_call.1} parent=0 // pred_region
    _
  $region21: #{tpu_custom_call.1} parent=0 // pred_fallthru
    _
  %v21 = vld [vmem:[%s1] sm:$0xff]
  %v22 = vld [vmem:[%s1 + $0x8] sm:$0xff]
  %v23 = vld [vmem:[%s1 + $0x10] sm:$0xf]
  %27 = vst [vmem:[#allocation1] ss:$4 sm:$0xff] %v21
  %s28 = scalar_lea.vmem [#allocation1], 32
  %29 = vst [vmem:[%s28] ss:$4 sm:$0xff] %v22
  %v30 = vld.sshfl [vmem:[#allocation1] sm:$0xff pattern:$0x73625140]
  %v31 = vld.sshfl [vmem:[#allocation1 + $0x8] sm:$0xff pattern:$0x73625140]
  %v32 = vld.sshfl [vmem:[#allocation1 + $0x10] sm:$0xff pattern:$0x73625140]
  %v33 = vld.sshfl [vmem:[#allocation1 + $0x18] sm:$0xff pattern:$0x73625140]
  %v34 = vld.sshfl [vmem:[#allocation1 + $0x20] sm:$0xff pattern:$0x73625140]
  %v35 = vld.sshfl [vmem:[#allocation1 + $0x28] sm:$0xff pattern:$0x73625140]
  %v36 = vld.sshfl [vmem:[#allocation1 + $0x30] sm:$0xff pattern:$0x73625140]
  %v37 = vld.sshfl [vmem:[#allocation1 + $0x38] sm:$0xff pattern:$0x73625140]
  %38 = vst [vmem:[#allocation1] ss:$4 sm:$0xff] %v23
  %v39 = vld.sshfl [vmem:[#allocation1] sm:$0xff pattern:$0x73625140]
  %v40 = vld.sshfl [vmem:[#allocation1 + $0x8] sm:$0xff pattern:$0x73625140]
  %v51 = vpack.c.bf16 %v30, %v30
  %v52 = vpack.c.bf16 %v31, %v31
  %v53 = vpack.c.bf16 %v32, %v32
  %v54 = vpack.c.bf16 %v33, %v33
  %v55 = vpack.c.bf16 %v34, %v34
  %v56 = vpack.c.bf16 %v35, %v35
  %v57 = vpack.c.bf16 %v36, %v36
  %v58 = vpack.c.bf16 %v37, %v37
  %v59 = vpack.c.bf16 %v39, %v39
  %v60 = vpack.c.bf16 %v40, %v40
  %v61 = vld [vmem:[%s3] sm:$0xf]
  %v62 = vld [vmem:[%s3 + $0x4] sm:$0xf]
  %v63 = vld [vmem:[%s3 + $0x8] sm:$0xf]
  %v64 = vld [vmem:[%s3 + $0xc] sm:$0xf]
  %v65 = vld [vmem:[%s3 + $0x10] sm:$0xf]
  %v66 = vld [vmem:[%s3 + $0x14] sm:$0xf]
  %v67 = vld [vmem:[%s3 + $0x18] sm:$0xf]
  %v68 = vld [vmem:[%s3 + $0x1c] sm:$0xf]
  %v69 = vld [vmem:[%s3 + $0x20] sm:$0xf]
  %v70 = vld [vmem:[%s3 + $0x24] sm:$0xf]
  %v71 = vld [vmem:[%s3 + $0x28] sm:$0xf]
  %v72 = vld [vmem:[%s3 + $0x2c] sm:$0xf]
  %v73 = vld [vmem:[%s3 + $0x30] sm:$0xf]
  %v74 = vld [vmem:[%s3 + $0x34] sm:$0xf]
  %v75 = vld [vmem:[%s3 + $0x38] sm:$0xf]
  %v76 = vld [vmem:[%s3 + $0x3c] sm:$0xf]
  %v77 = vld [vmem:[%s3 + $0x40] sm:$0xf]
  %v78 = vld [vmem:[%s3 + $0x44] sm:$0xf]
  %v79 = vld [vmem:[%s3 + $0x48] sm:$0xf]
  %v80 = vld [vmem:[%s3 + $0x4c] sm:$0xf]
  %v81 = vld [vmem:[%s3 + $0x50] sm:$0xf]
  %v82 = vld [vmem:[%s3 + $0x54] sm:$0xf]
  %v83 = vld [vmem:[%s3 + $0x58] sm:$0xf]
  %v84 = vld [vmem:[%s3 + $0x5c] sm:$0xf]
  %v85 = vld [vmem:[%s3 + $0x60] sm:$0xf]
  %v86 = vld [vmem:[%s3 + $0x64] sm:$0xf]
  %v87 = vld [vmem:[%s3 + $0x68] sm:$0xf]
  %v88 = vld [vmem:[%s3 + $0x6c] sm:$0xf]
  %v89 = vld [vmem:[%s3 + $0x70] sm:$0xf]
  %v90 = vld [vmem:[%s3 + $0x74] sm:$0xf]
  %v91 = vld [vmem:[%s3 + $0x78] sm:$0xf]
  %v92 = vld [vmem:[%s3 + $0x7c] sm:$0xf]
  %v93 = vld [vmem:[%s3 + $0x80] sm:$0xf]
  %v94 = vld [vmem:[%s3 + $0x84] sm:$0xf]
  %v95 = vld [vmem:[%s3 + $0x88] sm:$0xf]
  %v96 = vld [vmem:[%s3 + $0x8c] sm:$0xf]
  %v97 = vld [vmem:[%s3 + $0x90] sm:$0xf]
  %v98 = vld [vmem:[%s3 + $0x94] sm:$0xf]
  %v99 = vld [vmem:[%s3 + $0x98] sm:$0xf]
  %v100 = vld [vmem:[%s3 + $0x9c] sm:$0xf]
  %v101 = vld [vmem:[%s3 + $0xa0] sm:$0xf]
  %v102 = vld [vmem:[%s3 + $0xa4] sm:$0xf]
  %v103 = vld [vmem:[%s3 + $0xa8] sm:$0xf]
  %v104 = vld [vmem:[%s3 + $0xac] sm:$0xf]
  %v105 = vld [vmem:[%s3 + $0xb0] sm:$0xf]
  %v106 = vld [vmem:[%s3 + $0xb4] sm:$0xf]
  %v107 = vld [vmem:[%s3 + $0xb8] sm:$0xf]
  %v108 = vld [vmem:[%s3 + $0xbc] sm:$0xf]
  %v109 = vld [vmem:[%s3 + $0xc0] sm:$0xf]
  %v110 = vld [vmem:[%s3 + $0xc4] sm:$0xf]
  %v111 = vld [vmem:[%s3 + $0xc8] sm:$0xf]
  %v112 = vld [vmem:[%s3 + $0xcc] sm:$0xf]
  %v113 = vld [vmem:[%s3 + $0xd0] sm:$0xf]
  %v114 = vld [vmem:[%s3 + $0xd4] sm:$0xf]
  %v115 = vld [vmem:[%s3 + $0xd8] sm:$0xf]
  %v116 = vld [vmem:[%s3 + $0xdc] sm:$0xf]
  %v117 = vld [vmem:[%s3 + $0xe0] sm:$0xf]
  %v118 = vld [vmem:[%s3 + $0xe4] sm:$0xf]
  %v119 = vld [vmem:[%s3 + $0xe8] sm:$0xf]
  %v120 = vld [vmem:[%s3 + $0xec] sm:$0xf]
  %v121 = vld [vmem:[%s3 + $0xf0] sm:$0xf]
  %v122 = vld [vmem:[%s3 + $0xf4] sm:$0xf]
  %v123 = vld [vmem:[%s3 + $0xf8] sm:$0xf]
  %v124 = vld [vmem:[%s3 + $0xfc] sm:$0xf]
  %v125 = vld [vmem:[%s3 + $0x100] sm:$0xf]
  %v126 = vld [vmem:[%s3 + $0x104] sm:$0xf]
  %v127 = vld [vmem:[%s3 + $0x108] sm:$0xf]
  %v128 = vld [vmem:[%s3 + $0x10c] sm:$0xf]
  %v129 = vld [vmem:[%s3 + $0x110] sm:$0xf]
  %v130 = vld [vmem:[%s3 + $0x114] sm:$0xf]
  %v131 = vld [vmem:[%s3 + $0x118] sm:$0xf]
  %v132 = vld [vmem:[%s3 + $0x11c] sm:$0xf]
  %v133 = vld [vmem:[%s3 + $0x120] sm:$0xf]
  %v134 = vld [vmem:[%s3 + $0x124] sm:$0xf]
  %v135 = vld [vmem:[%s3 + $0x128] sm:$0xf]
  %v136 = vld [vmem:[%s3 + $0x12c] sm:$0xf]
  %v137 = vld [vmem:[%s3 + $0x130] sm:$0xf]
  %v138 = vld [vmem:[%s3 + $0x134] sm:$0xf]
  %v139 = vld [vmem:[%s3 + $0x138] sm:$0xf]
  %v140 = vld [vmem:[%s3 + $0x13c] sm:$0xf]
  %v141 = vld [vmem:[%s3 + $0x140] sm:$0xf]
  %v142 = vld [vmem:[%s3 + $0x144] sm:$0xf]
  %v143 = vld [vmem:[%s3 + $0x148] sm:$0xf]
  %v144 = vld [vmem:[%s3 + $0x14c] sm:$0xf]
  %v145 = vld [vmem:[%s3 + $0x150] sm:$0xf]
  %v146 = vld [vmem:[%s3 + $0x154] sm:$0xf]
  %v147 = vld [vmem:[%s3 + $0x158] sm:$0xf]
  %v148 = vld [vmem:[%s3 + $0x15c] sm:$0xf]
  %v149 = vld [vmem:[%s3 + $0x160] sm:$0xf]
  %v150 = vld [vmem:[%s3 + $0x164] sm:$0xf]
  %v151 = vld [vmem:[%s3 + $0x168] sm:$0xf]
  %v152 = vld [vmem:[%s3 + $0x16c] sm:$0xf]
  %v153 = vld [vmem:[%s3 + $0x170] sm:$0xf]
  %v154 = vld [vmem:[%s3 + $0x174] sm:$0xf]
  %v155 = vld [vmem:[%s3 + $0x178] sm:$0xf]
  %v156 = vld [vmem:[%s3 + $0x17c] sm:$0xf]
  %v157 = vld [vmem:[%s3 + $0x180] sm:$0xf]
  %v158 = vld [vmem:[%s3 + $0x184] sm:$0xf]
  %v159 = vld [vmem:[%s3 + $0x188] sm:$0xf]
  %v160 = vld [vmem:[%s3 + $0x18c] sm:$0xf]
  %v161 = vld [vmem:[%s3 + $0x190] sm:$0xf]
  %v162 = vld [vmem:[%s3 + $0x194] sm:$0xf]
  %v163 = vld [vmem:[%s3 + $0x198] sm:$0xf]
  %v164 = vld [vmem:[%s3 + $0x19c] sm:$0xf]
  %v165 = vld [vmem:[%s3 + $0x1a0] sm:$0xf]
  %v166 = vld [vmem:[%s3 + $0x1a4] sm:$0xf]
  %v167 = vld [vmem:[%s3 + $0x1a8] sm:$0xf]
  %v168 = vld [vmem:[%s3 + $0x1ac] sm:$0xf]
  %v169 = vld [vmem:[%s3 + $0x1b0] sm:$0xf]
  %v170 = vld [vmem:[%s3 + $0x1b4] sm:$0xf]
  %v171 = vld [vmem:[%s3 + $0x1b8] sm:$0xf]
  %v172 = vld [vmem:[%s3 + $0x1bc] sm:$0xf]
  %v173 = vld [vmem:[%s3 + $0x1c0] sm:$0xf]
  %v174 = vld [vmem:[%s3 + $0x1c4] sm:$0xf]
  %v175 = vld [vmem:[%s3 + $0x1c8] sm:$0xf]
  %v176 = vld [vmem:[%s3 + $0x1cc] sm:$0xf]
  %v177 = vld [vmem:[%s3 + $0x1d0] sm:$0xf]
  %v178 = vld [vmem:[%s3 + $0x1d4] sm:$0xf]
  %v179 = vld [vmem:[%s3 + $0x1d8] sm:$0xf]
  %v180 = vld [vmem:[%s3 + $0x1dc] sm:$0xf]
  %v181 = vld [vmem:[%s3 + $0x1e0] sm:$0xf]
  %v182 = vld [vmem:[%s3 + $0x1e4] sm:$0xf]
  %v183 = vld [vmem:[%s3 + $0x1e8] sm:$0xf]
  %v184 = vld [vmem:[%s3 + $0x1ec] sm:$0xf]
  %v185 = vld [vmem:[%s3 + $0x1f0] sm:$0xf]
  %v186 = vld [vmem:[%s3 + $0x1f4] sm:$0xf]
  %v187 = vld [vmem:[%s3 + $0x1f8] sm:$0xf]
  %v188 = vld [vmem:[%s3 + $0x1fc] sm:$0xf]
  %v189 = vld [vmem:[%s3 + $0x200] sm:$0xf]
  %v190 = vld [vmem:[%s3 + $0x204] sm:$0xf]
  %v191 = vld [vmem:[%s3 + $0x208] sm:$0xf]
  %v192 = vld [vmem:[%s3 + $0x20c] sm:$0xf]
  %v193 = vld [vmem:[%s3 + $0x210] sm:$0xf]
  %v194 = vld [vmem:[%s3 + $0x214] sm:$0xf]
  %v195 = vld [vmem:[%s3 + $0x218] sm:$0xf]
  %v196 = vld [vmem:[%s3 + $0x21c] sm:$0xf]
  %v197 = vld [vmem:[%s3 + $0x220] sm:$0xf]
  %v198 = vld [vmem:[%s3 + $0x224] sm:$0xf]
  %v199 = vld [vmem:[%s3 + $0x228] sm:$0xf]
  %v200 = vld [vmem:[%s3 + $0x22c] sm:$0xf]
  %v201 = vld [vmem:[%s3 + $0x230] sm:$0xf]
  %v202 = vld [vmem:[%s3 + $0x234] sm:$0xf]
  %v203 = vld [vmem:[%s3 + $0x238] sm:$0xf]
  %v204 = vld [vmem:[%s3 + $0x23c] sm:$0xf]
  %v205 = vld [vmem:[%s3 + $0x240] sm:$0xf]
  %v206 = vld [vmem:[%s3 + $0x244] sm:$0xf]
  %v207 = vld [vmem:[%s3 + $0x248] sm:$0xf]
  %v208 = vld [vmem:[%s3 + $0x24c] sm:$0xf]
  %v209 = vld [vmem:[%s3 + $0x250] sm:$0xf]
  %v210 = vld [vmem:[%s3 + $0x254] sm:$0xf]
  %v211 = vld [vmem:[%s3 + $0x258] sm:$0xf]
  %v212 = vld [vmem:[%s3 + $0x25c] sm:$0xf]
  %v213 = vld [vmem:[%s3 + $0x260] sm:$0xf]
  %v214 = vld [vmem:[%s3 + $0x264] sm:$0xf]
  %v215 = vld [vmem:[%s3 + $0x268] sm:$0xf]
  %v216 = vld [vmem:[%s3 + $0x26c] sm:$0xf]
  %v217 = vld [vmem:[%s3 + $0x270] sm:$0xf]
  %v218 = vld [vmem:[%s3 + $0x274] sm:$0xf]
  %v219 = vld [vmem:[%s3 + $0x278] sm:$0xf]
  %v220 = vld [vmem:[%s3 + $0x27c] sm:$0xf]
  %v221 = vld [vmem:[%s4] sm:$0x1]
  %v222 = vperm.slane %v221, 0
  %v383 = vunpack.c.l.b16 %v61
  %v384 = vunpack.c.l.b16 %v62
  %v385 = vunpack.c.l.b16 %v63
  %v386 = vunpack.c.l.b16 %v64
  %v387 = vunpack.c.l.b16 %v65
  %v388 = vunpack.c.l.b16 %v66
  %v389 = vunpack.c.l.b16 %v67
  %v390 = vunpack.c.l.b16 %v68
  %v391 = vunpack.c.l.b16 %v69
  %v392 = vunpack.c.l.b16 %v70
  %v393 = vunpack.c.l.b16 %v71
  %v394 = vunpack.c.l.b16 %v72
  %v395 = vunpack.c.l.b16 %v73
  %v396 = vunpack.c.l.b16 %v74
  %v397 = vunpack.c.l.b16 %v75
  %v398 = vunpack.c.l.b16 %v76
  %v399 = vunpack.c.l.b16 %v77
  %v400 = vunpack.c.l.b16 %v78
  %v401 = vunpack.c.l.b16 %v79
  %v402 = vunpack.c.l.b16 %v80
  %v403 = vunpack.c.l.b16 %v81
  %v404 = vunpack.c.l.b16 %v82
  %v405 = vunpack.c.l.b16 %v83
  %v406 = vunpack.c.l.b16 %v84
  %v407 = vunpack.c.l.b16 %v85
  %v408 = vunpack.c.l.b16 %v86
  %v409 = vunpack.c.l.b16 %v87
  %v410 = vunpack.c.l.b16 %v88
  %v411 = vunpack.c.l.b16 %v89
  %v412 = vunpack.c.l.b16 %v90
  %v413 = vunpack.c.l.b16 %v91
  %v414 = vunpack.c.l.b16 %v92
  %v415 = vunpack.c.l.b16 %v93
  %v416 = vunpack.c.l.b16 %v94
  %v417 = vunpack.c.l.b16 %v95
  %v418 = vunpack.c.l.b16 %v96
  %v419 = vunpack.c.l.b16 %v97
  %v420 = vunpack.c.l.b16 %v98
  %v421 = vunpack.c.l.b16 %v99
  %v422 = vunpack.c.l.b16 %v100
  %v423 = vunpack.c.l.b16 %v101
  %v424 = vunpack.c.l.b16 %v102
  %v425 = vunpack.c.l.b16 %v103
  %v426 = vunpack.c.l.b16 %v104
  %v427 = vunpack.c.l.b16 %v105
  %v428 = vunpack.c.l.b16 %v106
  %v429 = vunpack.c.l.b16 %v107
  %v430 = vunpack.c.l.b16 %v108
  %v431 = vunpack.c.l.b16 %v109
  %v432 = vunpack.c.l.b16 %v110
  %v433 = vunpack.c.l.b16 %v111
  %v434 = vunpack.c.l.b16 %v112
  %v435 = vunpack.c.l.b16 %v113
  %v436 = vunpack.c.l.b16 %v114
  %v437 = vunpack.c.l.b16 %v115
  %v438 = vunpack.c.l.b16 %v116
  %v439 = vunpack.c.l.b16 %v117
  %v440 = vunpack.c.l.b16 %v118
  %v441 = vunpack.c.l.b16 %v119
  %v442 = vunpack.c.l.b16 %v120
  %v443 = vunpack.c.l.b16 %v121
  %v444 = vunpack.c.l.b16 %v122
  %v445 = vunpack.c.l.b16 %v123
  %v446 = vunpack.c.l.b16 %v124
  %v447 = vunpack.c.l.b16 %v125
  %v448 = vunpack.c.l.b16 %v126
  %v449 = vunpack.c.l.b16 %v127
  %v450 = vunpack.c.l.b16 %v128
  %v451 = vunpack.c.l.b16 %v129
  %v452 = vunpack.c.l.b16 %v130
  %v453 = vunpack.c.l.b16 %v131
  %v454 = vunpack.c.l.b16 %v132
  %v455 = vunpack.c.l.b16 %v133
  %v456 = vunpack.c.l.b16 %v134
  %v457 = vunpack.c.l.b16 %v135
  %v458 = vunpack.c.l.b16 %v136
  %v459 = vunpack.c.l.b16 %v137
  %v460 = vunpack.c.l.b16 %v138
  %v461 = vunpack.c.l.b16 %v139
  %v462 = vunpack.c.l.b16 %v140
  %v463 = vunpack.c.l.b16 %v141
  %v464 = vunpack.c.l.b16 %v142
  %v465 = vunpack.c.l.b16 %v143
  %v466 = vunpack.c.l.b16 %v144
  %v467 = vunpack.c.l.b16 %v145
  %v468 = vunpack.c.l.b16 %v146
  %v469 = vunpack.c.l.b16 %v147
  %v470 = vunpack.c.l.b16 %v148
  %v471 = vunpack.c.l.b16 %v149
  %v472 = vunpack.c.l.b16 %v150
  %v473 = vunpack.c.l.b16 %v151
  %v474 = vunpack.c.l.b16 %v152
  %v475 = vunpack.c.l.b16 %v153
  %v476 = vunpack.c.l.b16 %v154
  %v477 = vunpack.c.l.b16 %v155
  %v478 = vunpack.c.l.b16 %v156
  %v479 = vunpack.c.l.b16 %v157
  %v480 = vunpack.c.l.b16 %v158
  %v481 = vunpack.c.l.b16 %v159
  %v482 = vunpack.c.l.b16 %v160
  %v483 = vunpack.c.l.b16 %v161
  %v484 = vunpack.c.l.b16 %v162
  %v485 = vunpack.c.l.b16 %v163
  %v486 = vunpack.c.l.b16 %v164
  %v487 = vunpack.c.l.b16 %v165
  %v488 = vunpack.c.l.b16 %v166
  %v489 = vunpack.c.l.b16 %v167
  %v490 = vunpack.c.l.b16 %v168
  %v491 = vunpack.c.l.b16 %v169
  %v492 = vunpack.c.l.b16 %v170
  %v493 = vunpack.c.l.b16 %v171
  %v494 = vunpack.c.l.b16 %v172
  %v495 = vunpack.c.l.b16 %v173
  %v496 = vunpack.c.l.b16 %v174
  %v497 = vunpack.c.l.b16 %v175
  %v498 = vunpack.c.l.b16 %v176
  %v499 = vunpack.c.l.b16 %v177
  %v500 = vunpack.c.l.b16 %v178
  %v501 = vunpack.c.l.b16 %v179
  %v502 = vunpack.c.l.b16 %v180
  %v503 = vunpack.c.l.b16 %v181
  %v504 = vunpack.c.l.b16 %v182
  %v505 = vunpack.c.l.b16 %v183
  %v506 = vunpack.c.l.b16 %v184
  %v507 = vunpack.c.l.b16 %v185
  %v508 = vunpack.c.l.b16 %v186
  %v509 = vunpack.c.l.b16 %v187
  %v510 = vunpack.c.l.b16 %v188
  %v511 = vunpack.c.l.b16 %v189
  %v512 = vunpack.c.l.b16 %v190
  %v513 = vunpack.c.l.b16 %v191
  %v514 = vunpack.c.l.b16 %v192
  %v515 = vunpack.c.l.b16 %v193
  %v516 = vunpack.c.l.b16 %v194
  %v517 = vunpack.c.l.b16 %v195
  %v518 = vunpack.c.l.b16 %v196
  %v519 = vunpack.c.l.b16 %v197
  %v520 = vunpack.c.l.b16 %v198
  %v521 = vunpack.c.l.b16 %v199
  %v522 = vunpack.c.l.b16 %v200
  %v523 = vunpack.c.l.b16 %v201
  %v524 = vunpack.c.l.b16 %v202
  %v525 = vunpack.c.l.b16 %v203
  %v526 = vunpack.c.l.b16 %v204
  %v527 = vunpack.c.l.b16 %v205
  %v528 = vunpack.c.l.b16 %v206
  %v529 = vunpack.c.l.b16 %v207
  %v530 = vunpack.c.l.b16 %v208
  %v531 = vunpack.c.l.b16 %v209
  %v532 = vunpack.c.l.b16 %v210
  %v533 = vunpack.c.l.b16 %v211
  %v534 = vunpack.c.l.b16 %v212
  %v535 = vunpack.c.l.b16 %v213
  %v536 = vunpack.c.l.b16 %v214
  %v537 = vunpack.c.l.b16 %v215
  %v538 = vunpack.c.l.b16 %v216
  %v539 = vunpack.c.l.b16 %v217
  %v540 = vunpack.c.l.b16 %v218
  %v541 = vunpack.c.l.b16 %v219
  %v542 = vunpack.c.l.b16 %v220
  %v543 = vpack.c.b16 %v384, %v383
  %v544 = vpack.c.b16 %v386, %v385
  %v545 = vpack.c.b16 %v388, %v387
  %v546 = vpack.c.b16 %v390, %v389
  %v547 = vpack.c.b16 %v392, %v391
  %v548 = vpack.c.b16 %v394, %v393
  %v549 = vpack.c.b16 %v396, %v395
  %v550 = vpack.c.b16 %v398, %v397
  %v551 = vpack.c.b16 %v400, %v399
  %v552 = vpack.c.b16 %v402, %v401
  %v553 = vpack.c.b16 %v404, %v403
  %v554 = vpack.c.b16 %v406, %v405
  %v555 = vpack.c.b16 %v408, %v407
  %v556 = vpack.c.b16 %v410, %v409
  %v557 = vpack.c.b16 %v412, %v411
  %v558 = vpack.c.b16 %v414, %v413
  %v559 = vpack.c.b16 %v416, %v415
  %v560 = vpack.c.b16 %v418, %v417
  %v561 = vpack.c.b16 %v420, %v419
  %v562 = vpack.c.b16 %v422, %v421
  %v563 = vpack.c.b16 %v424, %v423
  %v564 = vpack.c.b16 %v426, %v425
  %v565 = vpack.c.b16 %v428, %v427
  %v566 = vpack.c.b16 %v430, %v429
  %v567 = vpack.c.b16 %v432, %v431
  %v568 = vpack.c.b16 %v434, %v433
  %v569 = vpack.c.b16 %v436, %v435
  %v570 = vpack.c.b16 %v438, %v437
  %v571 = vpack.c.b16 %v440, %v439
  %v572 = vpack.c.b16 %v442, %v441
  %v573 = vpack.c.b16 %v444, %v443
  %v574 = vpack.c.b16 %v446, %v445
  %v575 = vpack.c.b16 %v448, %v447
  %v576 = vpack.c.b16 %v450, %v449
  %v577 = vpack.c.b16 %v452, %v451
  %v578 = vpack.c.b16 %v454, %v453
  %v579 = vpack.c.b16 %v456, %v455
  %v580 = vpack.c.b16 %v458, %v457
  %v581 = vpack.c.b16 %v460, %v459
  %v582 = vpack.c.b16 %v462, %v461
  %v583 = vpack.c.b16 %v464, %v463
  %v584 = vpack.c.b16 %v466, %v465
  %v585 = vpack.c.b16 %v468, %v467
  %v586 = vpack.c.b16 %v470, %v469
  %v587 = vpack.c.b16 %v472, %v471
  %v588 = vpack.c.b16 %v474, %v473
  %v589 = vpack.c.b16 %v476, %v475
  %v590 = vpack.c.b16 %v478, %v477
  %v591 = vpack.c.b16 %v480, %v479
  %v592 = vpack.c.b16 %v482, %v481
  %v593 = vpack.c.b16 %v484, %v483
  %v594 = vpack.c.b16 %v486, %v485
  %v595 = vpack.c.b16 %v488, %v487
  %v596 = vpack.c.b16 %v490, %v489
  %v597 = vpack.c.b16 %v492, %v491
  %v598 = vpack.c.b16 %v494, %v493
  %v599 = vpack.c.b16 %v496, %v495
  %v600 = vpack.c.b16 %v498, %v497
  %v601 = vpack.c.b16 %v500, %v499
  %v602 = vpack.c.b16 %v502, %v501
  %v603 = vpack.c.b16 %v504, %v503
  %v604 = vpack.c.b16 %v506, %v505
  %v605 = vpack.c.b16 %v508, %v507
  %v606 = vpack.c.b16 %v510, %v509
  %v607 = vpack.c.b16 %v512, %v511
  %v608 = vpack.c.b16 %v514, %v513
  %v609 = vpack.c.b16 %v516, %v515
  %v610 = vpack.c.b16 %v518, %v517
  %v611 = vpack.c.b16 %v520, %v519
  %v612 = vpack.c.b16 %v522, %v521
  %v613 = vpack.c.b16 %v524, %v523
  %v614 = vpack.c.b16 %v526, %v525
  %v615 = vpack.c.b16 %v528, %v527
  %v616 = vpack.c.b16 %v530, %v529
  %v617 = vpack.c.b16 %v532, %v531
  %v618 = vpack.c.b16 %v534, %v533
  %v619 = vpack.c.b16 %v536, %v535
  %v620 = vpack.c.b16 %v538, %v537
  %v621 = vpack.c.b16 %v540, %v539
  %v622 = vpack.c.b16 %v542, %v541
  %703 = vmatpush.bf16.msra.mxu0 %v550
  %704 = vmatpush.bf16.msra.mxu0 %v549
  %705 = vmatpush.bf16.msra.mxu0 %v548
  %706 = vmatpush.bf16.msra.mxu0 %v547
  %707 = vmatpush.bf16.msra.mxu0 %v546
  %708 = vmatpush.bf16.msra.mxu0 %v545
  %709 = vmatpush.bf16.msra.mxu0 %v544
  %710 = vmatpush.bf16.msra.mxu0 %v543
  %711 = vmatmul.bf16.gmra.mxu0 %v51
  %v712 = vpop.f32.mrf.mxu0
  %v713 = vadd.f32 %v222, %v712
  %v714 = vpop.f32.mrf.mxu0
  %715 = vdwg.mxu0
  %716 = vmatpush.bf16.msra.mxu0 %v558
  %717 = vmatpush.bf16.msra.mxu0 %v557
  %718 = vmatpush.bf16.msra.mxu0 %v556
  %719 = vmatpush.bf16.msra.mxu0 %v555
  %720 = vmatpush.bf16.msra.mxu0 %v554
  %721 = vmatpush.bf16.msra.mxu0 %v553
  %722 = vmatpush.bf16.msra.mxu0 %v552
  %723 = vmatpush.bf16.msra.mxu0 %v551
  %724 = vmatmul.bf16.gmra.mxu0 %v52
  %v725 = vpop.f32.mrf.mxu0
  %v726 = vadd.f32 %v713, %v725
  %v727 = vpop.f32.mrf.mxu0
  %728 = vdwg.mxu0
  %729 = vmatpush.bf16.msra.mxu0 %v566
  %730 = vmatpush.bf16.msra.mxu0 %v565
  %731 = vmatpush.bf16.msra.mxu0 %v564
  %732 = vmatpush.bf16.msra.mxu0 %v563
  %733 = vmatpush.bf16.msra.mxu0 %v562
  %734 = vmatpush.bf16.msra.mxu0 %v561
  %735 = vmatpush.bf16.msra.mxu0 %v560
  %736 = vmatpush.bf16.msra.mxu0 %v559
  %737 = vmatmul.bf16.gmra.mxu0 %v53
  %v738 = vpop.f32.mrf.mxu0
  %v739 = vadd.f32 %v726, %v738
  %v740 = vpop.f32.mrf.mxu0
  %741 = vdwg.mxu0
  %742 = vmatpush.bf16.msra.mxu0 %v574
  %743 = vmatpush.bf16.msra.mxu0 %v573
  %744 = vmatpush.bf16.msra.mxu0 %v572
  %745 = vmatpush.bf16.msra.mxu0 %v571
  %746 = vmatpush.bf16.msra.mxu0 %v570
  %747 = vmatpush.bf16.msra.mxu0 %v569
  %748 = vmatpush.bf16.msra.mxu0 %v568
  %749 = vmatpush.bf16.msra.mxu0 %v567
  %750 = vmatmul.bf16.gmra.mxu0 %v54
  %v751 = vpop.f32.mrf.mxu0
  %v752 = vadd.f32 %v739, %v751
  %v753 = vpop.f32.mrf.mxu0
  %754 = vdwg.mxu0
  %755 = vmatpush.bf16.msra.mxu0 %v582
  %756 = vmatpush.bf16.msra.mxu0 %v581
  %757 = vmatpush.bf16.msra.mxu0 %v580
  %758 = vmatpush.bf16.msra.mxu0 %v579
  %759 = vmatpush.bf16.msra.mxu0 %v578
  %760 = vmatpush.bf16.msra.mxu0 %v577
  %761 = vmatpush.bf16.msra.mxu0 %v576
  %762 = vmatpush.bf16.msra.mxu0 %v575
  %763 = vmatmul.bf16.gmra.mxu0 %v55
  %v764 = vpop.f32.mrf.mxu0
  %v765 = vadd.f32 %v752, %v764
  %v766 = vpop.f32.mrf.mxu0
  %767 = vdwg.mxu0
  %768 = vmatpush.bf16.msra.mxu0 %v590
  %769 = vmatpush.bf16.msra.mxu0 %v589
  %770 = vmatpush.bf16.msra.mxu0 %v588
  %771 = vmatpush.bf16.msra.mxu0 %v587
  %772 = vmatpush.bf16.msra.mxu0 %v586
  %773 = vmatpush.bf16.msra.mxu0 %v585
  %774 = vmatpush.bf16.msra.mxu0 %v584
  %775 = vmatpush.bf16.msra.mxu0 %v583
  %776 = vmatmul.bf16.gmra.mxu0 %v56
  %v777 = vpop.f32.mrf.mxu0
  %v778 = vadd.f32 %v765, %v777
  %v779 = vpop.f32.mrf.mxu0
  %780 = vdwg.mxu0
  %781 = vmatpush.bf16.msra.mxu0 %v598
  %782 = vmatpush.bf16.msra.mxu0 %v597
  %783 = vmatpush.bf16.msra.mxu0 %v596
  %784 = vmatpush.bf16.msra.mxu0 %v595
  %785 = vmatpush.bf16.msra.mxu0 %v594
  %786 = vmatpush.bf16.msra.mxu0 %v593
  %787 = vmatpush.bf16.msra.mxu0 %v592
  %788 = vmatpush.bf16.msra.mxu0 %v591
  %789 = vmatmul.bf16.gmra.mxu0 %v57
  %v790 = vpop.f32.mrf.mxu0
  %v791 = vadd.f32 %v778, %v790
  %v792 = vpop.f32.mrf.mxu0
  %793 = vdwg.mxu0
  %794 = vmatpush.bf16.msra.mxu0 %v606
  %795 = vmatpush.bf16.msra.mxu0 %v605
  %796 = vmatpush.bf16.msra.mxu0 %v604
  %797 = vmatpush.bf16.msra.mxu0 %v603
  %798 = vmatpush.bf16.msra.mxu0 %v602
  %799 = vmatpush.bf16.msra.mxu0 %v601
  %800 = vmatpush.bf16.msra.mxu0 %v600
  %801 = vmatpush.bf16.msra.mxu0 %v599
  %802 = vmatmul.bf16.gmra.mxu0 %v58
  %v803 = vpop.f32.mrf.mxu0
  %v804 = vadd.f32 %v791, %v803
  %v805 = vpop.f32.mrf.mxu0
  %806 = vdwg.mxu0
  %807 = vmatpush.bf16.msra.mxu0 %v614
  %808 = vmatpush.bf16.msra.mxu0 %v613
  %809 = vmatpush.bf16.msra.mxu0 %v612
  %810 = vmatpush.bf16.msra.mxu0 %v611
  %811 = vmatpush.bf16.msra.mxu0 %v610
  %812 = vmatpush.bf16.msra.mxu0 %v609
  %813 = vmatpush.bf16.msra.mxu0 %v608
  %814 = vmatpush.bf16.msra.mxu0 %v607
  %815 = vmatmul.bf16.gmra.mxu0 %v59
  %v816 = vpop.f32.mrf.mxu0
  %v817 = vadd.f32 %v804, %v816
  %v818 = vpop.f32.mrf.mxu0
  %819 = vdwg.mxu0
  %820 = vmatpush.bf16.msra.mxu0 %v622
  %821 = vmatpush.bf16.msra.mxu0 %v621
  %822 = vmatpush.bf16.msra.mxu0 %v620
  %823 = vmatpush.bf16.msra.mxu0 %v619
  %824 = vmatpush.bf16.msra.mxu0 %v618
  %825 = vmatpush.bf16.msra.mxu0 %v617
  %826 = vmatpush.bf16.msra.mxu0 %v616
  %827 = vmatpush.bf16.msra.mxu0 %v615
  %828 = vmatmul.bf16.gmra.mxu0 %v60
  %v829 = vpop.f32.mrf.mxu0
  %v830 = vadd.f32 %v817, %v829
  %v831 = vpop.f32.mrf.mxu0
  %832 = vdwg.mxu0
  %v833 = vmax.f32 %v830, 0.0
  %v834 = vpack.c.bf16 %v833, %v833
  %v835 = vld [vmem:[%s3 + $0x280] sm:$0xf]
  %v836 = vld [vmem:[%s3 + $0x284] sm:$0xf]
  %v837 = vld [vmem:[%s3 + $0x288] sm:$0xf]
  %v838 = vld [vmem:[%s3 + $0x28c] sm:$0xf]
  %v839 = vld [vmem:[%s3 + $0x290] sm:$0xf]
  %v840 = vld [vmem:[%s3 + $0x294] sm:$0xf]
  %v841 = vld [vmem:[%s3 + $0x298] sm:$0xf]
  %v842 = vld [vmem:[%s3 + $0x29c] sm:$0xf]
  %v851 = vunpack.c.l.b16 %v835
  %v852 = vunpack.c.l.b16 %v836
  %v853 = vunpack.c.l.b16 %v837
  %v854 = vunpack.c.l.b16 %v838
  %v855 = vunpack.c.l.b16 %v839
  %v856 = vunpack.c.l.b16 %v840
  %v857 = vunpack.c.l.b16 %v841
  %v858 = vunpack.c.l.b16 %v842
  %v859 = vpack.c.b16 %v852, %v851
  %v860 = vpack.c.b16 %v854, %v853
  %v861 = vpack.c.b16 %v856, %v855
  %v862 = vpack.c.b16 %v858, %v857
  %vm867 = vcmask 523264
  %v869 = vsel %vm867, %v834, 0
  %871 = vmatpush.bf16.msra.mxu0 0
  %872 = vmatpush.bf16.msra.mxu0 0
  %873 = vmatpush.bf16.msra.mxu0 0
  %874 = vmatpush.bf16.msra.mxu0 0
  %875 = vmatpush.bf16.msra.mxu0 %v862
  %876 = vmatpush.bf16.msra.mxu0 %v861
  %877 = vmatpush.bf16.msra.mxu0 %v860
  %878 = vmatpush.bf16.msra.mxu0 %v859
  %879 = vmatmul.bf16.gmra.mxu0 %v869
  %v880 = vpop.f32.mrf.mxu0
  %v881 = vadd.f32 0.0, %v880
  %v882 = vpop.f32.mrf.mxu0
  %883 = vdwg.mxu0
  %v884 = vld [vmem:[%s0] sm:$0x3]
  %v885 = vpack.c.bf16 %v884, %v884
  %v886 = vld [vmem:[%s3 + $0x2a0] sm:$0xf]
  %v887 = vld [vmem:[%s3 + $0x2a4] sm:$0x7]
  %v890 = vunpack.c.l.b16 %v886
  %v891 = vunpack.c.l.b16 %v887
  %v892 = vpack.c.b16 %v891, %v890
  %vm893 = vcmask 113664
  %v895 = vsel %vm893, %v885, 0
  %vm897 = vcmask 1046528
  %v899 = vsel %vm897, %v892, 0
  %901 = vmatpush.bf16.msra.mxu0 0
  %902 = vmatpush.bf16.msra.mxu0 0
  %903 = vmatpush.bf16.msra.mxu0 0
  %904 = vmatpush.bf16.msra.mxu0 0
  %905 = vmatpush.bf16.msra.mxu0 0
  %906 = vmatpush.bf16.msra.mxu0 0
  %907 = vmatpush.bf16.msra.mxu0 0
  %908 = vmatpush.bf16.msra.mxu0 %v899
  %909 = vmatmul.bf16.gmra.mxu0 %v895
  %v910 = vpop.f32.mrf.mxu0
  %v911 = vadd.f32 %v881, %v910
  %v912 = vpop.f32.mrf.mxu0
  %913 = vdwg.mxu0
  %v914 = vld [vmem:[%s4 + $0x1] sm:$0x1]
  %v915 = vperm.slane %v914, 0
  %v916 = vadd.f32 %v911, %v915
  %v917 = vmax.f32 %v916, 0.0
  %v918 = vpack.c.bf16 %v917, %v917
  %v919 = vld [vmem:[%s3 + $0x2b0] sm:$0xf]
  %v920 = vld [vmem:[%s3 + $0x2b4] sm:$0xf]
  %v921 = vld [vmem:[%s3 + $0x2b8] sm:$0xf]
  %v922 = vld [vmem:[%s3 + $0x2bc] sm:$0xf]
  %v923 = vld [vmem:[%s4 + $0x2] sm:$0x1]
  %v924 = vperm.slane %v923, 0
  %v929 = vunpack.c.l.b16 %v919
  %v930 = vunpack.c.l.b16 %v920
  %v931 = vunpack.c.l.b16 %v921
  %v932 = vunpack.c.l.b16 %v922
  %v933 = vpack.c.b16 %v930, %v929
  %v934 = vpack.c.b16 %v932, %v931
  %vm937 = vcmask 261120
  %v939 = vsel %vm937, %v918, 0
  %941 = vmatpush.bf16.msra.mxu0 0
  %942 = vmatpush.bf16.msra.mxu0 0
  %943 = vmatpush.bf16.msra.mxu0 0
  %944 = vmatpush.bf16.msra.mxu0 0
  %945 = vmatpush.bf16.msra.mxu0 0
  %946 = vmatpush.bf16.msra.mxu0 0
  %947 = vmatpush.bf16.msra.mxu0 %v934
  %948 = vmatpush.bf16.msra.mxu0 %v933
  %949 = vmatmul.bf16.gmra.mxu0 %v939
  %v950 = vpop.f32.mrf.mxu0
  %v951 = vadd.f32 %v924, %v950
  %v952 = vpop.f32.mrf.mxu0
  %953 = vdwg.mxu0
  %v954 = vadd.f32 %v951, 1.0
  %v955 = vmul.f32 %v951, %v951
  %957 = vrot.lane.b32.xlu0 %v955, 16
  %v958 = vpop.permute.xlu0 %957
  %v960 = vsub.f32 %v954, %v958
  %v961 = vmul.f32 %v951, 1.442695
  %v962 = vpow.pop %v961
  %v963 = vsub.f32 %v960, %v962
  %v964 = vmul.f32 %v963, -0.5
  %966 = vrot.lane.b32.xlu0 %v964, 112
  %v967 = vpop.permute.xlu0 %966
  %vm969 = vcmask 123904
  %v970 = vsel %vm969, %v967, 0.0
  %971 = vadd.xlane.f32.xlu0 %v970
  %v972 = vpop.xlane.xlu0 %971
  %vm973 = vcmask 1041408
  %v974 = vsel %vm973, %v972, 0.0
  %v975 = vrot.slane %v974, 4
  %v976 = vadd.f32 %v974, %v975
  %v977 = vrot.slane %v976, 2
  %v978 = vadd.f32 %v976, %v977
  %v979 = vrot.slane %v978, 1
  %v980 = vadd.f32 %v978, %v979
  %v981 = vmul.f32 %v980, 0.5
  %v982 = vadd.f32 %v881, %v951
  %v983 = vld [vmem:[%s4 + $0x3] sm:$0x1]
  %v984 = vperm.slane %v983, 0
  %986 = vrot.lane.b32.xlu0 %v984, 32
  %v987 = vpop.permute.xlu0 %986
  %v989 = vadd.f32 %v982, %v987
  %v990 = vperm.slane %v989, 0
  %v991 = vperm.slane %v989, 1
  %v992 = vld [vmem:[%s2] sm:$0xff]
  %v993 = vld [vmem:[%s2 + $0x8] sm:$0xff]
  %v994 = vpack.c.bf16 %v993, %v992
  %v995 = vld [vmem:[%s3 + $0x2a8] sm:$0x3]
  %998 = vrot.lane.b32.xlu0 %v990, 96
  %v999 = vpop.permute.xlu0 %998
  %1000 = vrot.lane.b32.xlu0 %v991, 96
  %v1001 = vpop.permute.xlu0 %1000
  %vm1004 = vcmask 23552
  %v1006 = vsel %vm1004, %v994, 0
  %vm1008 = vcmask 1040384
  %v1009 = vsel %vm1008, 4294967295, 65535
  %v1010 = vsel %vm973, %v1009, 0
  %v1012 = vand.u32 %v995, %v1010
  %1014 = vmatpush.bf16.msra.mxu0 0
  %1015 = vmatpush.bf16.msra.mxu0 0
  %1016 = vmatpush.bf16.msra.mxu0 0
  %1017 = vmatpush.bf16.msra.mxu0 0
  %1018 = vmatpush.bf16.msra.mxu0 0
  %1019 = vmatpush.bf16.msra.mxu0 0
  %1020 = vmatpush.bf16.msra.mxu0 0
  %1021 = vmatpush.bf16.msra.mxu0 %v1012
  %1022 = vmatmul.bf16.gmra.mxu0 %v1006
  %v1023 = vpop.f32.mrf.mxu0
  %v1024 = vadd.f32 %v999, %v1023
  %v1025 = vpop.f32.mrf.mxu0
  %v1026 = vadd.f32 %v1001, %v1025
  %1027 = vdwg.mxu0
  %v1028 = vmax.f32 %v1024, 0.0
  %v1029 = vmax.f32 %v1026, 0.0
  %v1030 = vpack.c.bf16 %v1029, %v1028
  %v1031 = vld [vmem:[%s3 + $0x2c0] sm:$0xf]
  %v1032 = vld [vmem:[%s3 + $0x2c4] sm:$0xf]
  %v1033 = vld [vmem:[%s3 + $0x2c8] sm:$0xf]
  %v1034 = vld [vmem:[%s3 + $0x2cc] sm:$0xf]
  %v1035 = vld [vmem:[%s4 + $0x4] sm:$0x1]
  %v1036 = vperm.slane %v1035, 0
  %v1041 = vunpack.c.l.b16 %v1031
  %v1042 = vunpack.c.l.b16 %v1032
  %v1043 = vunpack.c.l.b16 %v1033
  %v1044 = vunpack.c.l.b16 %v1034
  %v1045 = vpack.c.b16 %v1042, %v1041
  %v1046 = vpack.c.b16 %v1044, %v1043
  %v1050 = vsel %vm937, %v1030, 0
  %1052 = vmatpush.bf16.msra.mxu0 0
  %1053 = vmatpush.bf16.msra.mxu0 0
  %1054 = vmatpush.bf16.msra.mxu0 0
  %1055 = vmatpush.bf16.msra.mxu0 0
  %1056 = vmatpush.bf16.msra.mxu0 0
  %1057 = vmatpush.bf16.msra.mxu0 0
  %1058 = vmatpush.bf16.msra.mxu0 %v1046
  %1059 = vmatpush.bf16.msra.mxu0 %v1045
  %1060 = vmatmul.bf16.gmra.mxu0 %v1050
  %v1061 = vpop.f32.mrf.mxu0
  %v1062 = vadd.f32 %v1036, %v1061
  %v1063 = vpop.f32.mrf.mxu0
  %v1064 = vadd.f32 %v1036, %v1063
  %1065 = vdwg.mxu0
  %v1066 = vlaneseq
  %v1067 = vand.u32 %v1066, 127
  %vm1068 = vcmp.ge.s32.totalorder %v1067, 1
  %vm1069 = vcmp.lt.s32.totalorder %v1067, 5
  %vm1070 = vmand %vm1068, %vm1069
  %v1071 = vmul.f32 %v1062, %v1062
  %v1072 = vmul.f32 %v1064, %v1064
  %v1073 = vsel %vm1070, %v1071, 0.0
  %v1074 = vsel %vm1070, %v1072, 0.0
  %vm1075 = vcmask 64512
  %v1076 = vsel %vm1075, %v1073, 0.0
  %1077 = vadd.xlane.f32.xlu0 %v1076
  %v1078 = vpop.xlane.xlu0 %1077
  %v1079 = vsel %vm1075, %v1074, 0.0
  %1080 = vadd.xlane.f32.xlu0 %v1079
  %v1081 = vpop.xlane.xlu0 %1080
  %v1082 = vadd.f32 %v1078, 1e-12
  %v1083 = vadd.f32 %v1081, 1e-12
  %v1084 = vrsqrt.pop %v1082
  %v1085 = vmul.f32 %v1084, %v1082
  %v1086 = vmul.f32 %v1085, %v1084
  %v1087 = vmul.f32 0.5, %v1086
  %v1088 = vsub.f32 1.5, %v1087
  %v1089 = vmul.f32 %v1084, %v1088
  %vm1090 = vweird.f32 %v1082
  %vm1091 = vweird.f32 %v1084
  %vm1092 = vmor %vm1090, %vm1091
  %v1093 = vsel %vm1092, %v1084, %v1089
  %v1094 = vrsqrt.pop %v1083
  %v1095 = vmul.f32 %v1094, %v1083
  %v1096 = vmul.f32 %v1095, %v1094
  %v1097 = vmul.f32 0.5, %v1096
  %v1098 = vsub.f32 1.5, %v1097
  %v1099 = vmul.f32 %v1094, %v1098
  %vm1100 = vweird.f32 %v1083
  %vm1101 = vweird.f32 %v1094
  %vm1102 = vmor %vm1100, %vm1101
  %v1103 = vsel %vm1102, %v1094, %v1099
  %vm1104 = vcmp.eq.s32.totalorder %v1067, 0
  %v1105 = vxor.u32 %v1062, 2147483648
  %v1106 = vxor.u32 %v1064, 2147483648
  %v1107 = vmul.f32 %v1105, 1.442695
  %v1108 = vpow.pop %v1107
  %v1109 = vmul.f32 %v1106, 1.442695
  %v1110 = vpow.pop %v1109
  %v1111 = vadd.f32 %v1108, 1.0
  %v1112 = vadd.f32 %v1110, 1.0
  %v1113 = vrcp.pop %v1111
  %v1114 = vmul.f32 %v1111, %v1113
  %v1115 = vsub.f32 1.0, %v1114
  %v1116 = vmul.f32 %v1113, %v1115
  %v1117 = vadd.f32 %v1113, %v1116
  %vm1118 = vweird.f32 %v1111
  %vm1119 = vweird.f32 %v1113
  %vm1120 = vmor %vm1118, %vm1119
  %v1121 = vsel %vm1120, %v1113, %v1117
  %v1122 = vand.u32 2147483647, %v1111
  %vm1123 = vcmp.eq.f32.partialorder %v1122, 8.507059e+37
  %v1124 = vand.u32 %v1111, 2147483648
  %v1125 = vor.u32 1.1754944e-38, %v1124
  %v1126 = vsel %vm1123, %v1125, %v1121
  %v1127 = vmul.f32 1.0, %v1126
  %v1128 = vrcp.pop %v1112
  %v1129 = vmul.f32 %v1112, %v1128
  %v1130 = vsub.f32 1.0, %v1129
  %v1131 = vmul.f32 %v1128, %v1130
  %v1132 = vadd.f32 %v1128, %v1131
  %vm1133 = vweird.f32 %v1112
  %vm1134 = vweird.f32 %v1128
  %vm1135 = vmor %vm1133, %vm1134
  %v1136 = vsel %vm1135, %v1128, %v1132
  %v1137 = vand.u32 2147483647, %v1112
  %vm1138 = vcmp.eq.f32.partialorder %v1137, 8.507059e+37
  %v1139 = vand.u32 %v1112, 2147483648
  %v1140 = vor.u32 1.1754944e-38, %v1139
  %v1141 = vsel %vm1138, %v1140, %v1136
  %v1142 = vmul.f32 1.0, %v1141
  %v1143 = vmul.f32 %v1062, %v1093
  %v1144 = vmul.f32 %v1064, %v1103
  %v1145 = vsel %vm1070, %v1143, %v1062
  %v1146 = vsel %vm1070, %v1144, %v1064
  %v1147 = vsel %vm1104, %v1127, %v1145
  %v1148 = vsel %vm1104, %v1142, %v1146
  %1149 = vst.msk [vmem:[%s5] sm:$0xff] %vm1075, %v1147
  %1150 = vst.msk [vmem:[%s5 + $0x8] sm:$0xff] %vm1075, %v1148
  %v1151 = vsel %vm1104, %v981, 0.0
  %vm1152 = vcmask 57344
  %1153 = vst.msk [vmem:[%s5 + $0x10] sm:$0x1] %vm1152, %v1151
  // Predicated region
  $region22: #{tpu_custom_call.1} parent=0 // pred_check
    _
  $region23: #{tpu_custom_call.1} parent=0 // pred_check_branch
    %1155 = sbr.rel (0) target = $region25
  $region24: #{tpu_custom_call.1} parent=0 // pred_region
    _
  $region25: #{tpu_custom_call.1} parent=0 // pred_fallthru
    _
  // Predicated region
  $region26: #{tpu_custom_call.1} parent=0 // pred_check
    _
  $region27: #{tpu_custom_call.1} parent=0 // pred_check_branch
    %1157 = sbr.rel (0) target = $region29
  $region28: #{tpu_custom_call.1} parent=0 // pred_region
    _
  $region29: #{tpu_custom_call.1} parent=0 // pred_fallthru
    _

</llo_original>
